<compile_context>
chip_gen: v5e
topology: v5e:2x2
jax: 0.10.0
libtpu: 0.0.40
codegen_flags: <defaults>
</compile_context>

<pallas_src>
import jax
import jax.numpy as jnp
from jax import lax
from jax.experimental import pallas as pl
from jax.experimental.pallas import tpu as pltpu


def _round_up(x, m):
    return ((x + m - 1) // m) * m


def _round_down(x, m):
    return (x // m) * m


def _sublane(itemsize):
    # second-minor tiling granularity per element width
    return {1: 32, 2: 16, 4: 8}.get(itemsize, 8)


def _vmem_budget_bytes():
    """Per-generation VMEM budget (~3/4 of per-TensorCore physical VMEM)."""
    phys = 64 * 1024 * 1024  # conservative fallback (v7x per-TC VMEM)
    try:
        info = pltpu.get_tpu_info()
        cap = getattr(info, "vmem_capacity_bytes", None)
        if cap:
            phys = int(cap)
    except Exception:
        pass
    return (phys * 3) // 4, phys


def _guarded_accumulate(gstep, total_steps, has_tail, overcover, accumulate):
    """Run accumulate(masked): masking only on the tail step; skip the
    duplicate (clamped) block produced by an uneven 2-way chunk split."""
    if has_tail:
        @pl.when(gstep < total_steps - 1)
        def _():
            accumulate(False)

        @pl.when(gstep == total_steps - 1)
        def _():
            accumulate(True)
        # gstep >= total_steps (duplicate clamped block) is skipped entirely.
    elif overcover:
        @pl.when(gstep < total_steps)
        def _():
            accumulate(False)
    else:
        accumulate(False)


def _make_softmax_kernel(c, ts, spc, total_steps, s_valid, has_tail, overcover):
    def kernel(logits_ref, target_ref, inter_ref, union_ref, inter_acc, union_acc):
        s = pl.program_id(1)
        gstep = pl.program_id(0) * spc + s

        @pl.when(s == 0)
        def _():
            inter_acc[...] = jnp.zeros_like(inter_acc)
            union_acc[...] = jnp.zeros_like(union_acc)

        def accumulate(masked):
            x = logits_ref[...].astype(jnp.float32)      # [N, C, TS]
            tgt = target_ref[...].astype(jnp.int32)      # [N, 1, TS]
            if masked:
                lane = lax.broadcasted_iota(jnp.int32, (1, 1, ts), 2) + gstep * ts
                valid = lane < s_valid
                # mask BEFORE exp/compare: edge-block lanes hold undefined data
                x = jnp.where(valid, x, 0.0)
                tgt = jnp.where(valid, tgt, -1)
            class_ids = lax.broadcasted_iota(jnp.int32, (1, c, 1), 1)
            # softmax over the channel axis (F.softmax(logits, dim=1)), exact divide
            m = jnp.max(x, axis=1, keepdims=True)
            e = jnp.exp(x - m)
            pred = e / jnp.sum(e, axis=1, keepdims=True)
            if masked:
                pred = jnp.where(valid, pred, 0.0)
            onehot = tgt == class_ids                    # bool [N, C, TS]
            # per-step lane reduction into tiny [N, C] accumulators
            inter_acc[...] += jnp.sum(jnp.where(onehot, pred, 0.0), axis=2)
            union_acc[...] += (jnp.sum(pred, axis=2)
                               + jnp.sum(onehot.astype(jnp.float32), axis=2))

        _guarded_accumulate(gstep, total_steps, has_tail, overcover, accumulate)

        @pl.when(s == spc - 1)
        def _():
            inter_ref[0] = inter_acc[...]
            union_ref[0] = union_acc[...]

    return kernel


def _make_binary_kernel(ts, spc, total_steps, s_valid, has_tail, overcover):
    # Sigmoid path: only sum(p), sum(t), sum(p*t) are accumulated; the two-class
    # inter/union are reconstructed analytically in the JAX epilogue.
    def kernel(logits_ref, target_ref, sp_ref, st_ref, spt_ref,
               sp_acc, st_acc, spt_acc):
        s = pl.program_id(1)
        gstep = pl.program_id(0) * spc + s

        @pl.when(s == 0)
        def _():
            sp_acc[...] = jnp.zeros_like(sp_acc)
            st_acc[...] = jnp.zeros_like(st_acc)
            spt_acc[...] = jnp.zeros_like(spt_acc)

        def accumulate(masked):
            x = logits_ref[...].astype(jnp.float32)          # [N, 1, TS]
            t = target_ref[...].astype(jnp.int32) == 1       # bool [N, 1, TS]
            if masked:
                lane = lax.broadcasted_iota(jnp.int32, (1, 1, ts), 2) + gstep * ts
                valid = lane < s_valid
                x = jnp.where(valid, x, 0.0)
                t = jnp.logical_and(t, valid)
            p = 1.0 / (1.0 + jnp.exp(-x))                    # exact sigmoid
            if masked:
                p = jnp.where(valid, p, 0.0)
            sp_acc[...] += jnp.sum(p, axis=2)                       # sum(p)
            st_acc[...] += jnp.sum(t.astype(jnp.float32), axis=2)   # sum(t)
            spt_acc[...] += jnp.sum(jnp.where(t, p, 0.0), axis=2)   # sum(p*t)

        _guarded_accumulate(gstep, total_steps, has_tail, overcover, accumulate)

        @pl.when(s == spc - 1)
        def _():
            sp_ref[0] = sp_acc[...]
            st_ref[0] = st_acc[...]
            spt_ref[0] = spt_acc[...]

    return kernel


class DiceLossPallas:
    """JAX/Pallas port of the PyTorch Dice_Loss module (forward pass)."""

    def __init__(self, nclass, class_weights=None, smooth=1e-05,
                 max_tile_lanes=65536, vmem_budget_bytes=None):
        self.smooth = float(smooth)
        self.max_tile_lanes = int(max_tile_lanes)
        if vmem_budget_bytes is None:
            budget, phys = _vmem_budget_bytes()
        else:
            budget, phys = int(vmem_budget_bytes), None
        self.vmem_budget_bytes = budget
        self.vmem_limit_bytes = (min(phys, budget + (8 << 20)) if phys
                                 else budget + (8 << 20))
        # NOTE: class_weights is constructed but (as in the PyTorch module's
        # forward()) never used; kept only for parameter parity.
        if class_weights is None:
            self.class_weights = jnp.ones((1, nclass), jnp.float32)
        else:
            cw = jnp.asarray(class_weights, jnp.float32)
            assert nclass == cw.shape[0]
            self.class_weights = cw

    def __call__(self, logits, target, mask=None):
        # TODO(synk): optional `mask` path of forward() not implemented in-kernel.
        assert mask is None, "mask path not implemented"

        N, C_in = int(logits.shape[0]), int(logits.shape[1])
        S = 1
        for d in logits.shape[2:]:
            S *= int(d)
        C_out = C_in if C_in > 1 else 2

        # Stream native dtypes (no wrapper upcast / pad -> no extra HBM pass).
        logits_r = logits.reshape(N, C_in, S)
        if (jnp.issubdtype(target.dtype, jnp.integer)
                and jnp.dtype(target.dtype).itemsize <= 4):
            tgt_r = target.reshape(N, 1, S)
        else:
            tgt_r = target.reshape(N, 1, S).astype(jnp.int32)

        # ---- per-generation spatial tile sizing ------------------------------
        l_it = jnp.dtype(logits_r.dtype).itemsize
        t_it = jnp.dtype(tgt_r.dtype).itemsize
        bytes_per_lane = (
            2 * N * _round_up(C_in, _sublane(l_it)) * l_it     # logits, dbl-buffered
            + 2 * N * _round_up(1, _sublane(t_it)) * t_it)     # target, dbl-buffered
        # TODO(synk): if VMEM-limited for large N with tiny C, fold N*C into the
        # sublane axis (block (N*C_in, TS)) to avoid per-sample sublane padding.
        ts_cap = max(128, _round_down(
            min(self.vmem_budget_bytes // bytes_per_lane, self.max_tile_lanes), 128))
        if S < 128:
            TS = S                                   # block equals full array dim
        else:
            TS = min(ts_cap, _round_down(S, 128))    # never exceeds the array extent

        total_steps = (S + TS - 1) // TS
        G = 2 if total_steps >= 2 else 1             # feed both v7x TensorCores
        spc = (total_steps + G - 1) // G             # steps per chunk
        overcover = (G * spc) != total_steps
        has_tail = (S % TS) != 0

        def in_idx(p, s):
            # clamp so an uneven split never produces a fully out-of-bounds block
            return (0, 0, jnp.minimum(p * spc + s, total_steps - 1))

        compiler_params = pltpu.CompilerParams(
            dimension_semantics=("parallel", "arbitrary"),
            vmem_limit_bytes=int(self.vmem_limit_bytes),
        )
        cost = pl.CostEstimate(
            flops=10 * N * C_out * S,
            transcendentals=N * C_in * S,
            bytes_accessed=N * C_in * S * l_it + N * S * t_it
                           + 2 * G * N * C_out * 4,
        )
        in_specs = [
            pl.BlockSpec((N, C_in, TS), in_idx),
            pl.BlockSpec((N, 1, TS), in_idx),
        ]

        if C_in > 1:
            kernel = _make_softmax_kernel(C_in, TS, spc, total_steps, S,
                                          has_tail, overcover)
            inter_p, union_p = pl.pallas_call(
                kernel,
                out_shape=(jax.ShapeDtypeStruct((G, N, C_out), jnp.float32),
                           jax.ShapeDtypeStruct((G, N, C_out), jnp.float32)),
                grid_spec=pltpu.PrefetchScalarGridSpec(
                    num_scalar_prefetch=0,
                    grid=(G, spc),
                    in_specs=in_specs,
                    out_specs=[pl.BlockSpec((1, N, C_out), lambda p, s: (p, 0, 0)),
                               pl.BlockSpec((1, N, C_out), lambda p, s: (p, 0, 0))],
                    scratch_shapes=[pltpu.VMEM((N, C_out), jnp.float32),
                                    pltpu.VMEM((N, C_out), jnp.float32)]),
                compiler_params=compiler_params,
                cost_estimate=cost,
            )(logits_r, tgt_r)
            inter = jnp.sum(inter_p, axis=0)                      # [N, C]
            union = jnp.sum(union_p, axis=0)
        else:
            kernel = _make_binary_kernel(TS, spc, total_steps, S,
                                         has_tail, overcover)
            sp_p, st_p, spt_p = pl.pallas_call(
                kernel,
                out_shape=(jax.ShapeDtypeStruct((G, N, 1), jnp.float32),
                           jax.ShapeDtypeStruct((G, N, 1), jnp.float32),
                           jax.ShapeDtypeStruct((G, N, 1), jnp.float32)),
                grid_spec=pltpu.PrefetchScalarGridSpec(
                    num_scalar_prefetch=0,
                    grid=(G, spc),
                    in_specs=in_specs,
                    out_specs=[pl.BlockSpec((1, N, 1), lambda p, s: (p, 0, 0)),
                               pl.BlockSpec((1, N, 1), lambda p, s: (p, 0, 0)),
                               pl.BlockSpec((1, N, 1), lambda p, s: (p, 0, 0))],
                    scratch_shapes=[pltpu.VMEM((N, 1), jnp.float32),
                                    pltpu.VMEM((N, 1), jnp.float32),
                                    pltpu.VMEM((N, 1), jnp.float32)]),
                compiler_params=compiler_params,
                cost_estimate=cost,
            )(logits_r, tgt_r)
            sp = jnp.sum(sp_p, axis=0)[:, 0]                      # [N]  sum(p)
            st = jnp.sum(st_p, axis=0)[:, 0]                      # [N]  sum(t)
            spt = jnp.sum(spt_p, axis=0)[:, 0]                    # [N]  sum(p*t)
            s_f = jnp.float32(S)
            # class 0 uses (1-p, 1-t); class 1 uses (p, t)
            inter = jnp.stack([s_f - sp - st + spt, spt], axis=1)         # [N, 2]
            union = jnp.stack([2.0 * s_f - sp - st, sp + st], axis=1)     # [N, 2]

        dice = (2.0 * inter + self.smooth) / (union + self.smooth)
        return 1.0 - jnp.mean(dice)


def _dice_loss_reference(logits, target, smooth):
    """Pure-JAX reference mirroring the PyTorch forward (mask=None)."""
    N, C = logits.shape[0], logits.shape[1]
    logits = logits.reshape(N, C, -1).astype(jnp.float32)
    target = target.reshape(N, 1, -1).astype(jnp.int32)
    if C > 1:
        pred = jax.nn.softmax(logits, axis=1)
        nclass = C
    else:
        p = jax.nn.sigmoid(logits)
        pred = jnp.concatenate([1.0 - p, p], axis=1)
        nclass = 2
    onehot = (target == jnp.arange(nclass, dtype=jnp.int32)[None, :, None]).astype(
        jnp.float32)
    inter = jnp.sum(pred * onehot, axis=2)
    union = jnp.sum(pred + onehot, axis=2)
    dice = (2 * inter + smooth) / (union + smooth)
    return 1.0 - jnp.mean(dice)


if __name__ == "__main__":
    key = jax.random.PRNGKey(0)
    k1, k2, k3, k4, k5, k6, k7, k8 = jax.random.split(key, 8)

    # Test 1: multi-class softmax path, aligned spatial extent, single step.
    N, C, H, W = 2, 4, 16, 16
    logits = jax.random.normal(k1, (N, C, H, W), dtype=jnp.float32)
    target = jax.random.randint(k2, (N, 1, H, W), 0, C, dtype=jnp.int32)
    loss = jax.block_until_ready(DiceLossPallas(nclass=C, smooth=1e-05)(logits, target))
    ref = jax.block_until_ready(_dice_loss_reference(logits, target, 1e-05))
    assert jnp.allclose(loss, ref, rtol=1e-3, atol=1e-3), (loss, ref)

    # Test 2: binary (C == 1) sigmoid path via analytic 3-sum accumulation.
    logits1 = jax.random.normal(k3, (2, 1, 16, 16), dtype=jnp.float32)
    target1 = jax.random.randint(k4, (2, 1, 16, 16), 0, 2, dtype=jnp.int32)
    loss1 = jax.block_until_ready(DiceLossPallas(nclass=2, smooth=1e-05)(logits1, target1))
    ref1 = jax.block_until_ready(_dice_loss_reference(logits1, target1, 1e-05))
    assert jnp.allclose(loss1, ref1, rtol=1e-3, atol=1e-3), (loss1, ref1)

    # Test 3: bf16 logits, ragged spatial extent, forced-small tile ->
    # 2-way parallel split with uneven chunks (skipped duplicate block),
    # tail-step-only masking, no wrapper padding.
    logits2 = jax.random.normal(k5, (2, 4, 18, 30), dtype=jnp.bfloat16)
    target2 = jax.random.randint(k6, (2, 1, 18, 30), 0, 4, dtype=jnp.int32)
    loss2 = jax.block_until_ready(
        DiceLossPallas(nclass=4, smooth=1e-05, max_tile_lanes=128)(logits2, target2))
    ref2 = jax.block_until_ready(_dice_loss_reference(logits2, target2, 1e-05))
    assert jnp.allclose(loss2, ref2, rtol=2e-3, atol=2e-3), (loss2, ref2)

    # Test 4: binary path with ragged extent and forced-small tile.
    logits3 = jax.random.normal(k7, (2, 1, 10, 30), dtype=jnp.float32)
    target3 = jax.random.randint(k8, (2, 1, 10, 30), 0, 2, dtype=jnp.int32)
    loss3 = jax.block_until_ready(
        DiceLossPallas(nclass=2, smooth=1e-05, max_tile_lanes=128)(logits3, target3))
    ref3 = jax.block_until_ready(_dice_loss_reference(logits3, target3, 1e-05))
    assert jnp.allclose(loss3, ref3, rtol=2e-3, atol=2e-3), (loss3, ref3)

    print("KERNEL_OK")
</pallas_src>

<mosaic_0001>
module attributes {stable_mosaic.version = 11 : i64} {
  func.func @kernel(%arg0: i32, %arg1: i32, %arg2: memref<2x4x256xf32, #tpu.memory_space<vmem>>, %arg3: memref<2x1x256xi32, #tpu.memory_space<vmem>>, %arg4: memref<1x2x4xf32, #tpu.memory_space<vmem>>, %arg5: memref<1x2x4xf32, #tpu.memory_space<vmem>>, %arg6: memref<2x4xf32, #tpu.memory_space<vmem>>, %arg7: memref<2x4xf32, #tpu.memory_space<vmem>>) attributes {dimension_semantics = [#tpu.dimension_semantics<parallel>, #tpu.dimension_semantics<arbitrary>], iteration_bounds = array<i64: 1, 1>, scalar_prefetch = 0 : i64, scratch_operands = 2 : i64, tpu.core_type = #tpu.core_type<tc>, window_params = [{transform_indices = @transform_0, window_bounds = array<i64: 2, 4, 256>}, {transform_indices = @transform_1, window_bounds = array<i64: 2, 1, 256>}, {transform_indices = @transform_2, window_bounds = array<i64: 1, 2, 4>}, {transform_indices = @transform_3, window_bounds = array<i64: 1, 2, 4>}]} {
    %c0_i32 = arith.constant 0 : i32
    %0 = arith.cmpi eq, %arg1, %c0_i32 : i32
    %1 = arith.extui %0 : i1 to i32
    %c0_i32_0 = arith.constant 0 : i32
    %2 = arith.cmpi ne, %1, %c0_i32_0 : i32
    scf.if %2 {
      %cst_21 = arith.constant 0.000000e+00 : f32
      %35 = vector.broadcast %cst_21 : f32 to vector<2x4xf32>
      %c0_22 = arith.constant 0 : index
      %c0_23 = arith.constant 0 : index
      %36 = vector.load %arg6[%c0_22, %c0_23] : memref<2x4xf32, #tpu.memory_space<vmem>>, vector<2x4xf32>
      tpu.vector_store %arg6[%c0_22, %c0_23], %35 {strides = array<i32>} : memref<2x4xf32, #tpu.memory_space<vmem>>, vector<2x4xf32>,
      %cst_24 = arith.constant 0.000000e+00 : f32
      %37 = vector.broadcast %cst_24 : f32 to vector<2x4xf32>
      %c0_25 = arith.constant 0 : index
      %c0_26 = arith.constant 0 : index
      %38 = vector.load %arg7[%c0_25, %c0_26] : memref<2x4xf32, #tpu.memory_space<vmem>>, vector<2x4xf32>
      tpu.vector_store %arg7[%c0_25, %c0_26], %37 {strides = array<i32>} : memref<2x4xf32, #tpu.memory_space<vmem>>, vector<2x4xf32>,
    } else {
    }
    %c0 = arith.constant 0 : index
    %c0_1 = arith.constant 0 : index
    %c0_2 = arith.constant 0 : index
    %3 = vector.load %arg2[%c0, %c0_1, %c0_2] : memref<2x4x256xf32, #tpu.memory_space<vmem>>, vector<2x4x256xf32>
    %c0_3 = arith.constant 0 : index
    %c0_4 = arith.constant 0 : index
    %c0_5 = arith.constant 0 : index
    %4 = vector.load %arg3[%c0_3, %c0_4, %c0_5] : memref<2x1x256xi32, #tpu.memory_space<vmem>>, vector<2x1x256xi32>
    %5 = tpu.iota {dimensions = array<i32: 1>} : vector<1x4x1xi32>
    %cst = arith.constant dense<0xFF800000> : vector<2x256xf32>
    %6 = vector.multi_reduction <maximumf>, %3, %cst [1] : vector<2x4x256xf32> to vector<2x256xf32>
    %7 = vector.shape_cast %6 : vector<2x256xf32> to vector<2x1x256xf32>
    %8 = vector.broadcast %7 : vector<2x1x256xf32> to vector<2x4x256xf32>
    %9 = arith.subf %3, %8 : vector<2x4x256xf32>
    %10 = math.exp %9 : vector<2x4x256xf32>
    %cst_6 = arith.constant dense<0.000000e+00> : vector<2x256xf32>
    %11 = vector.multi_reduction <add>, %10, %cst_6 [1] : vector<2x4x256xf32> to vector<2x256xf32>
    %12 = vector.shape_cast %11 : vector<2x256xf32> to vector<2x1x256xf32>
    %13 = vector.broadcast %12 : vector<2x1x256xf32> to vector<2x4x256xf32>
    %14 = arith.divf %10, %13 : vector<2x4x256xf32>
    %15 = vector.broadcast %4 : vector<2x1x256xi32> to vector<2x4x256xi32>
    %16 = vector.broadcast %5 : vector<1x4x1xi32> to vector<2x4x256xi32>
    %17 = arith.cmpi eq, %15, %16 : vector<2x4x256xi32>
    %c0_7 = arith.constant 0 : index
    %c0_8 = arith.constant 0 : index
    %18 = vector.load %arg6[%c0_7, %c0_8] : memref<2x4xf32, #tpu.memory_space<vmem>>, vector<2x4xf32>
    %cst_9 = arith.constant 0.000000e+00 : f32
    %19 = vector.broadcast %cst_9 : f32 to vector<2x4x256xf32>
    %20 = arith.select %17, %14, %19 : vector<2x4x256xi1>, vector<2x4x256xf32>
    %cst_10 = arith.constant dense<0.000000e+00> : vector<2x4xf32>
    %21 = vector.multi_reduction <add>, %20, %cst_10 [2] : vector<2x4x256xf32> to vector<2x4xf32>
    %22 = arith.addf %18, %21 : vector<2x4xf32>
    %c0_11 = arith.constant 0 : index
    %c0_12 = arith.constant 0 : index
    %23 = vector.load %arg6[%c0_11, %c0_12] : memref<2x4xf32, #tpu.memory_space<vmem>>, vector<2x4xf32>
    tpu.vector_store %arg6[%c0_11, %c0_12], %22 {strides = array<i32>} : memref<2x4xf32, #tpu.memory_space<vmem>>, vector<2x4xf32>,
    %c0_13 = arith.constant 0 : index
    %c0_14 = arith.constant 0 : index
    %24 = vector.load %arg7[%c0_13, %c0_14] : memref<2x4xf32, #tpu.memory_space<vmem>>, vector<2x4xf32>
    %cst_15 = arith.constant dense<0.000000e+00> : vector<2x4xf32>
    %25 = vector.multi_reduction <add>, %14, %cst_15 [2] : vector<2x4x256xf32> to vector<2x4xf32>
    %26 = arith.extui %17 : vector<2x4x256xi1> to vector<2x4x256xi32>
    %27 = arith.sitofp %26 : vector<2x4x256xi32> to vector<2x4x256xf32>
    %cst_16 = arith.constant dense<0.000000e+00> : vector<2x4xf32>
    %28 = vector.multi_reduction <add>, %27, %cst_16 [2] : vector<2x4x256xf32> to vector<2x4xf32>
    %29 = arith.addf %25, %28 : vector<2x4xf32>
    %30 = arith.addf %24, %29 : vector<2x4xf32>
    %c0_17 = arith.constant 0 : index
    %c0_18 = arith.constant 0 : index
    %31 = vector.load %arg7[%c0_17, %c0_18] : memref<2x4xf32, #tpu.memory_space<vmem>>, vector<2x4xf32>
    tpu.vector_store %arg7[%c0_17, %c0_18], %30 {strides = array<i32>} : memref<2x4xf32, #tpu.memory_space<vmem>>, vector<2x4xf32>,
    %c0_i32_19 = arith.constant 0 : i32
    %32 = arith.cmpi eq, %arg1, %c0_i32_19 : i32
    %33 = arith.extui %32 : i1 to i32
    %c0_i32_20 = arith.constant 0 : i32
    %34 = arith.cmpi ne, %33, %c0_i32_20 : i32
    scf.if %34 {
      %c0_21 = arith.constant 0 : index
      %c0_22 = arith.constant 0 : index
      %35 = vector.load %arg6[%c0_21, %c0_22] : memref<2x4xf32, #tpu.memory_space<vmem>>, vector<2x4xf32>
      %c0_23 = arith.constant 0 : index
      %c0_24 = arith.constant 0 : index
      %c0_25 = arith.constant 0 : index
      %36 = vector.load %arg4[%c0_23, %c0_24, %c0_25] : memref<1x2x4xf32, #tpu.memory_space<vmem>>, vector<1x2x4xf32>
      %37 = vector.shape_cast %36 : vector<1x2x4xf32> to vector<2x4xf32>
      %38 = vector.shape_cast %35 : vector<2x4xf32> to vector<1x2x4xf32>
      tpu.vector_store %arg4[%c0_23, %c0_24, %c0_25], %38 {strides = array<i32>} : memref<1x2x4xf32, #tpu.memory_space<vmem>>, vector<1x2x4xf32>,
      %c0_26 = arith.constant 0 : index
      %c0_27 = arith.constant 0 : index
      %39 = vector.load %arg7[%c0_26, %c0_27] : memref<2x4xf32, #tpu.memory_space<vmem>>, vector<2x4xf32>
      %c0_28 = arith.constant 0 : index
      %c0_29 = arith.constant 0 : index
      %c0_30 = arith.constant 0 : index
      %40 = vector.load %arg5[%c0_28, %c0_29, %c0_30] : memref<1x2x4xf32, #tpu.memory_space<vmem>>, vector<1x2x4xf32>
      %41 = vector.shape_cast %40 : vector<1x2x4xf32> to vector<2x4xf32>
      %42 = vector.shape_cast %39 : vector<2x4xf32> to vector<1x2x4xf32>
      tpu.vector_store %arg5[%c0_28, %c0_29, %c0_30], %42 {strides = array<i32>} : memref<1x2x4xf32, #tpu.memory_space<vmem>>, vector<1x2x4xf32>,
    } else {
    }
    return
  }
  func.func @transform_0(%arg0: i32, %arg1: i32) -> (i32, i32, i32) {
    %c1_i32 = arith.constant 1 : i32
    %0 = arith.muli %arg0, %c1_i32 : i32
    %1 = arith.addi %0, %arg1 : i32
    %c0_i32 = arith.constant 0 : i32
    %2 = arith.minsi %1, %c0_i32 : i32
    %c0_i32_0 = arith.constant 0 : i32
    %c0_i32_1 = arith.constant 0 : i32
    %c0_i32_2 = arith.constant 0 : i32
    return %c0_i32_0, %c0_i32_1, %2 : i32, i32, i32
  }
  func.func @transform_1(%arg0: i32, %arg1: i32) -> (i32, i32, i32) {
    %c1_i32 = arith.constant 1 : i32
    %0 = arith.muli %arg0, %c1_i32 : i32
    %1 = arith.addi %0, %arg1 : i32
    %c0_i32 = arith.constant 0 : i32
    %2 = arith.minsi %1, %c0_i32 : i32
    %c0_i32_0 = arith.constant 0 : i32
    %c0_i32_1 = arith.constant 0 : i32
    %c0_i32_2 = arith.constant 0 : i32
    return %c0_i32_0, %c0_i32_1, %2 : i32, i32, i32
  }
  func.func @transform_2(%arg0: i32, %arg1: i32) -> (i32, i32, i32) {
    %c0_i32 = arith.constant 0 : i32
    %c0_i32_0 = arith.constant 0 : i32
    %c0_i32_1 = arith.constant 0 : i32
    return %arg0, %c0_i32, %c0_i32_0 : i32, i32, i32
  }
  func.func @transform_3(%arg0: i32, %arg1: i32) -> (i32, i32, i32) {
    %c0_i32 = arith.constant 0 : i32
    %c0_i32_0 = arith.constant 0 : i32
    %c0_i32_1 = arith.constant 0 : i32
    return %arg0, %c0_i32, %c0_i32_0 : i32, i32, i32
  }
}

</mosaic_0001>

<llo_original>
// kernel: tpu_custom_call.1
$region0: #{tpu_custom_call.1}
  #allocation0 [shape = 'u32[]', space=smem, size = 0x4, offset = 0x4, fixed_abs, tag = 'smem constant byte address 0x4 - core index']
  #allocation1 [shape = 'u32[72,128]{1,0:T(1,128)}', space=vmem, size = 0x9000, scoped, tag = 'internal scratch']
  #allocation2 [shape = 'f32[2,4]{1,0:T(2,128)}', space=vmem, size = 0x400, scoped, tag = 'scratch operand']
  #allocation3 [shape = 'f32[2,4]{1,0:T(2,128)}', space=vmem, size = 0x400, scoped, tag = 'scratch operand']
  %s0 = inlined_call_operand.hbm [shape: f32[2,4,256], index: 0, kind: input, shape index: {}]
  %s1 = inlined_call_operand.hbm [shape: s32[2,1,256], index: 1, kind: input, shape index: {}]
  %s2 = inlined_call_operand.hbm [shape: f32[1,2,4], index: 2, kind: output, shape index: {0}]
  %s3 = inlined_call_operand.hbm [shape: f32[1,2,4], index: 3, kind: output, shape index: {1}]
  %4 = xla_tuple %s2, %s3
  %s5 = sld [smem:[#allocation0]]
  $region42: #{tpu_custom_call.1} parent=0
    _
  %s7 = ssub.s32 1, %s5
  %s8 = scalar_select 0, %s7, %s5
  $region1: #{tpu_custom_call.1} parent=0
    #allocation4 [shape = 'u8[8192]{0}', space=vmem, size = 0x2000, scoped, tag = 'input window, operand 0, single buffered']
    #allocation5 [shape = 's32[1]{0}', space=sflag, size = 0x4, scoped, tag = 'scoped memory for tpu_custom_call.1']
    #allocation6 [shape = 's32[1]{0}', space=sflag, size = 0x4, scoped, tag = 'scoped memory for tpu_custom_call.1']
    #allocation7 [shape = 'u8[2048]{0}', space=vmem, size = 0x800, scoped, tag = 'input window, operand 1, single buffered']
    #allocation8 [shape = 's32[1]{0}', space=sflag, size = 0x4, scoped, tag = 'scoped memory for tpu_custom_call.1']
    #allocation9 [shape = 'u8[1024]{0}', space=vmem, size = 0x400, scoped, tag = 'output window, operand 0, single buffered']
    #allocation10 [shape = 'u8[1024]{0}', space=vmem, size = 0x400, scoped, tag = 'output window, operand 1, single buffered']
    #allocation11 [shape = 's32[1]{0}', space=sflag, size = 0x4, scoped, tag = 'scoped memory for tpu_custom_call.1']
    %9 = vsyncpa [#allocation5], 0
    %10 = vsyncpa [#allocation8], 0
    %11 = vsyncpa [#allocation6], 0
    %12 = vsyncpa [#allocation11], 0
    // Predicated region
    $region2: #{tpu_custom_call.1} parent=1 // pred_check
      _
    $region3: #{tpu_custom_call.1} parent=1 // pred_check_branch
      %14 = sbr.rel (0) target = $region5
    $region4: #{tpu_custom_call.1} parent=1 // pred_region
      %s15 = sadd.s32 0, 0
      %p16 = scmp.lt.s32.totalorder %s15, 0
      %s17 = scalar_select %p16, %s15, 0
      %s18 = smul.u32 2, %s17
      %20 = vsyncadd [#allocation5], 0
      %s21 = smul.addr %s18, 4
      %s22 = scalar_lea.hbm %s0, %s21
      %s23 = sshll.u32 %s22, 4
      %s24 = int_to_ptr.hbm [resolvable:$true] %s23
      %s25 = sshll.u32 [#allocation4], 4
      %s26 = int_to_ptr.vmem [resolvable:$true] %s25
      %31 = dma.hbm_to_vmem [thread:$0]  %s24, 256, %s26, [#allocation5], 128, 128, 8
    $region5: #{tpu_custom_call.1} parent=1 // pred_fallthru
      _
    // Predicated region
    $region6: #{tpu_custom_call.1} parent=1 // pred_check
      _
    $region7: #{tpu_custom_call.1} parent=1 // pred_check_branch
      %33 = sbr.rel (0) target = $region9
    $region8: #{tpu_custom_call.1} parent=1 // pred_region
      %s34 = sadd.s32 0, 0
      %p35 = scmp.lt.s32.totalorder %s34, 0
      %s36 = scalar_select %p35, %s34, 0
      %s37 = smul.u32 2, %s36
      %39 = vsyncadd [#allocation8], 0
      %s40 = scalar_lea.hbm %s1, %s37
      %s41 = sshll.u32 %s40, 4
      %s42 = int_to_ptr.hbm [resolvable:$true] %s41
      %s43 = sshll.u32 [#allocation7], 4
      %s44 = int_to_ptr.vmem [resolvable:$true] %s43
      %49 = dma.hbm_to_vmem [thread:$0]  %s42, 64, %s44, [#allocation8], 32, 32, 2
    $region9: #{tpu_custom_call.1} parent=1 // pred_fallthru
      _
    // Predicated region
    $region10: #{tpu_custom_call.1} parent=1 // pred_check
      _
    $region11: #{tpu_custom_call.1} parent=1 // pred_check_branch
      %51 = sbr.rel (0) target = $region13
    $region12: #{tpu_custom_call.1} parent=1 // pred_region
      %53 = dma.done [#allocation5], 256
    $region13: #{tpu_custom_call.1} parent=1 // pred_fallthru
      _
    // Predicated region
    $region14: #{tpu_custom_call.1} parent=1 // pred_check
      _
    $region15: #{tpu_custom_call.1} parent=1 // pred_check_branch
      %55 = sbr.rel (0) target = $region17
    $region16: #{tpu_custom_call.1} parent=1 // pred_region
      %57 = dma.done [#allocation8], 64
    $region17: #{tpu_custom_call.1} parent=1 // pred_fallthru
      _
    %s58 = sadd.s32 0, 0
    %p59 = scmp.lt.s32.totalorder %s58, 0
    %s60 = scalar_select %p59, %s58, 0
    %s61 = smul.u32 2, %s60
    %s62 = sadd.s32 0, 0
    %p63 = scmp.lt.s32.totalorder %s62, 0
    %s64 = scalar_select %p63, %s62, 0
    %s65 = smul.u32 2, %s64
    %p66 = scmp.eq.s32.totalorder 0, 0
    // Predicated region
    $region18: #{tpu_custom_call.1} parent=1 // pred_check
      %p67 = pneg %p66
    $region19: #{tpu_custom_call.1} parent=1 // pred_check_branch
      %69 = sbr.rel (%p67) target = $region21
    $region20: #{tpu_custom_call.1} parent=1 // pred_region
      %vm70 = vcmask 25600
      %71 = vst.msk [vmem:[#allocation2] sm:$0x3] %vm70, 0.0
      %72 = vst.msk [vmem:[#allocation3] sm:$0x3] %vm70, 0.0
    $region21: #{tpu_custom_call.1} parent=1 // pred_fallthru
      _
    %v73 = vld [vmem:[#allocation4] sm:$0xff]
    %v74 = vld [vmem:[#allocation4 + $0x8] sm:$0xff]
    %v75 = vld [vmem:[#allocation7] sm:$0x3]
    %v76 = vld [vmem:[#allocation7 + $0x2] sm:$0x3]
    %v77 = vlaneseq
    %v78 = vshrl.u32 %v77, 7
    %81 = vst [vmem:[#allocation1] ss:$2 sm:$0xff] %v73
    %v82 = vld.sshfl [vmem:[#allocation1] sm:$0xff pattern:$0x75316420]
    %v83 = vld.sshfl [vmem:[#allocation1 + $0x8] sm:$0xff pattern:$0x75316420]
    %s84 = scalar_lea.vmem [#allocation1], 16
    %85 = vst [vmem:[%s84] ss:$2 sm:$0xff] %v74
    %v86 = vld.sshfl [vmem:[#allocation1 + $0x10] sm:$0xff pattern:$0x75316420]
    %v87 = vld.sshfl [vmem:[#allocation1 + $0x18] sm:$0xff pattern:$0x75316420]
    %vm92 = vcmask 1043456
    %v93 = vsel %vm92, %v82, -inf
    %v94 = vrot.slane %v93, 4
    %v95 = vmax.f32 %v93, %v94
    %v96 = vrot.slane %v95, 2
    %v97 = vmax.f32 %v95, %v96
    %v98 = vrot.slane %v97, 1
    %v99 = vmax.f32 %v97, %v98
    %v100 = vsel %vm92, %v83, -inf
    %v101 = vrot.slane %v100, 4
    %v102 = vmax.f32 %v100, %v101
    %v103 = vrot.slane %v102, 2
    %v104 = vmax.f32 %v102, %v103
    %v105 = vrot.slane %v104, 1
    %v106 = vmax.f32 %v104, %v105
    %v107 = vsel %vm92, %v86, -inf
    %v108 = vrot.slane %v107, 4
    %v109 = vmax.f32 %v107, %v108
    %v110 = vrot.slane %v109, 2
    %v111 = vmax.f32 %v109, %v110
    %v112 = vrot.slane %v111, 1
    %v113 = vmax.f32 %v111, %v112
    %v114 = vsel %vm92, %v87, -inf
    %v115 = vrot.slane %v114, 4
    %v116 = vmax.f32 %v114, %v115
    %v117 = vrot.slane %v116, 2
    %v118 = vmax.f32 %v116, %v117
    %v119 = vrot.slane %v118, 1
    %v120 = vmax.f32 %v118, %v119
    %v125 = vrot.slane %v106, 4
    %v126 = vrot.slane %v120, 4
    %v127 = vsel %vm92, %v99, %v125
    %v128 = vsel %vm92, %v113, %v126
    %v131 = vsub.f32 %v73, %v127
    %v132 = vsub.f32 %v74, %v128
    %v133 = vmul.f32 %v131, 1.442695
    %v134 = vpow.pop %v133
    %v135 = vmul.f32 %v132, 1.442695
    %v136 = vpow.pop %v135
    %139 = vst [vmem:[#allocation1] ss:$2 sm:$0xff] %v134
    %v140 = vld.sshfl [vmem:[#allocation1] sm:$0xff pattern:$0x75316420]
    %v141 = vld.sshfl [vmem:[#allocation1 + $0x8] sm:$0xff pattern:$0x75316420]
    %s142 = scalar_lea.vmem [#allocation1], 16
    %143 = vst [vmem:[%s142] ss:$2 sm:$0xff] %v136
    %v144 = vld.sshfl [vmem:[#allocation1 + $0x10] sm:$0xff pattern:$0x75316420]
    %v145 = vld.sshfl [vmem:[#allocation1 + $0x18] sm:$0xff pattern:$0x75316420]
    %v150 = vsel %vm92, %v140, 0.0
    %v151 = vrot.slane %v150, 4
    %v152 = vadd.f32 %v150, %v151
    %v153 = vrot.slane %v152, 2
    %v154 = vadd.f32 %v152, %v153
    %v155 = vrot.slane %v154, 1
    %v156 = vadd.f32 %v154, %v155
    %v157 = vsel %vm92, %v141, 0.0
    %v158 = vrot.slane %v157, 4
    %v159 = vadd.f32 %v157, %v158
    %v160 = vrot.slane %v159, 2
    %v161 = vadd.f32 %v159, %v160
    %v162 = vrot.slane %v161, 1
    %v163 = vadd.f32 %v161, %v162
    %v164 = vsel %vm92, %v144, 0.0
    %v165 = vrot.slane %v164, 4
    %v166 = vadd.f32 %v164, %v165
    %v167 = vrot.slane %v166, 2
    %v168 = vadd.f32 %v166, %v167
    %v169 = vrot.slane %v168, 1
    %v170 = vadd.f32 %v168, %v169
    %v171 = vsel %vm92, %v145, 0.0
    %v172 = vrot.slane %v171, 4
    %v173 = vadd.f32 %v171, %v172
    %v174 = vrot.slane %v173, 2
    %v175 = vadd.f32 %v173, %v174
    %v176 = vrot.slane %v175, 1
    %v177 = vadd.f32 %v175, %v176
    %v182 = vrot.slane %v163, 4
    %v183 = vrot.slane %v177, 4
    %v184 = vsel %vm92, %v156, %v182
    %v185 = vsel %vm92, %v170, %v183
    %v188 = vrcp.pop %v184
    %v189 = vmul.f32 %v184, %v188
    %v190 = vsub.f32 1.0, %v189
    %v191 = vmul.f32 %v188, %v190
    %v192 = vadd.f32 %v188, %v191
    %vm193 = vweird.f32 %v184
    %vm194 = vweird.f32 %v188
    %vm195 = vmor %vm193, %vm194
    %v196 = vsel %vm195, %v188, %v192
    %v197 = vand.u32 2147483647, %v184
    %vm198 = vcmp.eq.f32.partialorder %v197, 8.507059e+37
    %v199 = vand.u32 %v184, 2147483648
    %v200 = vor.u32 1.1754944e-38, %v199
    %v201 = vsel %vm198, %v200, %v196
    %v202 = vmul.f32 %v134, %v201
    %v203 = vrcp.pop %v185
    %v204 = vmul.f32 %v185, %v203
    %v205 = vsub.f32 1.0, %v204
    %v206 = vmul.f32 %v203, %v205
    %v207 = vadd.f32 %v203, %v206
    %vm208 = vweird.f32 %v185
    %vm209 = vweird.f32 %v203
    %vm210 = vmor %vm208, %vm209
    %v211 = vsel %vm210, %v203, %v207
    %v212 = vand.u32 2147483647, %v185
    %vm213 = vcmp.eq.f32.partialorder %v212, 8.507059e+37
    %v214 = vand.u32 %v185, 2147483648
    %v215 = vor.u32 1.1754944e-38, %v214
    %v216 = vsel %vm213, %v215, %v211
    %v217 = vmul.f32 %v136, %v216
    %v218 = vperm.slane %v75, 0
    %v219 = vperm.slane %v75, 1
    %v220 = vperm.slane %v76, 0
    %v221 = vperm.slane %v76, 1
    %vm222 = vcmp.eq.s32.totalorder %v218, %v78
    %vm223 = vcmp.eq.s32.totalorder %v219, %v78
    %vm224 = vcmp.eq.s32.totalorder %v220, %v78
    %vm225 = vcmp.eq.s32.totalorder %v221, %v78
    %v226 = vld [vmem:[#allocation2] sm:$0x3]
    %229 = vst [vmem:[#allocation1] ss:$2 sm:$0xff] %v202
    %v230 = vld.sshfl [vmem:[#allocation1] sm:$0xff pattern:$0x75316420]
    %v231 = vld.sshfl [vmem:[#allocation1 + $0x8] sm:$0xff pattern:$0x75316420]
    %s232 = scalar_lea.vmem [#allocation1], 16
    %233 = vst [vmem:[%s232] ss:$2 sm:$0xff] %v217
    %v234 = vld.sshfl [vmem:[#allocation1 + $0x10] sm:$0xff pattern:$0x75316420]
    %v235 = vld.sshfl [vmem:[#allocation1 + $0x18] sm:$0xff pattern:$0x75316420]
    %v240 = vsel %vm222, %v230, 0.0
    %v241 = vsel %vm223, %v231, 0.0
    %v242 = vsel %vm224, %v234, 0.0
    %v243 = vsel %vm225, %v235, 0.0
    %v244 = vsel %vm92, %v240, 0.0
    %v245 = vsel %vm92, %v241, 0.0
    %v246 = vadd.f32 %v244, %v245
    %247 = vadd.xlane.f32.xlu0 %v246
    %v248 = vpop.xlane.xlu0 %247
    %v249 = vsel %vm92, %v242, 0.0
    %v250 = vsel %vm92, %v243, 0.0
    %v251 = vadd.f32 %v249, %v250
    %252 = vadd.xlane.f32.xlu0 %v251
    %v253 = vpop.xlane.xlu0 %252
    %v256 = vlaneseq
    %v257 = vand.u32 %v256, 127
    %v258 = vperm.slane %v248, %v257
    %v259 = vperm.slane %v253, %v257
    %vm260 = vcmask 1041409
    %v261 = vsel %vm260, %v259, %v258
    %v263 = vadd.f32 %v226, %v261
    %vm264 = vcmask 25600
    %265 = vst.msk [vmem:[#allocation2] sm:$0x3] %vm264, %v263
    %v266 = vld [vmem:[#allocation3] sm:$0x3]
    %267 = vst [vmem:[#allocation1] ss:$2 sm:$0xff] %v202
    %v268 = vld.sshfl [vmem:[#allocation1] sm:$0xff pattern:$0x75316420]
    %v269 = vld.sshfl [vmem:[#allocation1 + $0x8] sm:$0xff pattern:$0x75316420]
    %s270 = scalar_lea.vmem [#allocation1], 16
    %271 = vst [vmem:[%s270] ss:$2 sm:$0xff] %v217
    %v272 = vld.sshfl [vmem:[#allocation1 + $0x10] sm:$0xff pattern:$0x75316420]
    %v273 = vld.sshfl [vmem:[#allocation1 + $0x18] sm:$0xff pattern:$0x75316420]
    %v278 = vsel %vm92, %v268, 0.0
    %v279 = vsel %vm92, %v269, 0.0
    %v280 = vadd.f32 %v278, %v279
    %281 = vadd.xlane.f32.xlu0 %v280
    %v282 = vpop.xlane.xlu0 %281
    %v283 = vsel %vm92, %v272, 0.0
    %v284 = vsel %vm92, %v273, 0.0
    %v285 = vadd.f32 %v283, %v284
    %286 = vadd.xlane.f32.xlu0 %v285
    %v287 = vpop.xlane.xlu0 %286
    %v288 = vsel %vm222, 1, 0
    %v289 = vsel %vm223, 1, 0
    %v290 = vsel %vm224, 1, 0
    %v291 = vsel %vm225, 1, 0
    %v292 = vcvt.s32.f32 %v288
    %v293 = vcvt.s32.f32 %v289
    %v294 = vcvt.s32.f32 %v290
    %v295 = vcvt.s32.f32 %v291
    %v296 = vsel %vm92, %v292, 0.0
    %v297 = vsel %vm92, %v293, 0.0
    %v298 = vadd.f32 %v296, %v297
    %299 = vadd.xlane.f32.xlu0 %v298
    %v300 = vpop.xlane.xlu0 %299
    %v301 = vsel %vm92, %v294, 0.0
    %v302 = vsel %vm92, %v295, 0.0
    %v303 = vadd.f32 %v301, %v302
    %304 = vadd.xlane.f32.xlu0 %v303
    %v305 = vpop.xlane.xlu0 %304
    %v306 = vadd.f32 %v282, %v300
    %v307 = vadd.f32 %v287, %v305
    %v310 = vperm.slane %v306, %v257
    %v311 = vperm.slane %v307, %v257
    %v312 = vsel %vm260, %v311, %v310
    %v314 = vadd.f32 %v266, %v312
    %315 = vst.msk [vmem:[#allocation3] sm:$0x3] %vm264, %v314
    // Predicated region
    $region22: #{tpu_custom_call.1} parent=1 // pred_check
      %p316 = pneg %p66
    $region23: #{tpu_custom_call.1} parent=1 // pred_check_branch
      %318 = sbr.rel (%p316) target = $region25
    $region24: #{tpu_custom_call.1} parent=1 // pred_region
      %v319 = vld [vmem:[#allocation2] sm:$0x3]
      %320 = vst.msk [vmem:[#allocation9] sm:$0x3] %vm264, %v319
      %v321 = vld [vmem:[#allocation3] sm:$0x3]
      %322 = vst.msk [vmem:[#allocation10] sm:$0x3] %vm264, %v321
    $region25: #{tpu_custom_call.1} parent=1 // pred_fallthru
      _
    // Predicated region
    $region26: #{tpu_custom_call.1} parent=1 // pred_check
      _
    $region27: #{tpu_custom_call.1} parent=1 // pred_check_branch
      %324 = sbr.rel (0) target = $region29
    $region28: #{tpu_custom_call.1} parent=1 // pred_region
      %326 = vsyncadd [#allocation6], 0
      %s328 = sshll.u32 [#allocation9], 4
      %s329 = int_to_ptr.vmem [resolvable:$true] %s328
      %s330 = sshll.u32 %s2, 4
      %s331 = int_to_ptr.hbm [resolvable:$true] %s330
      %333 = dma.vmem_to_hbm [thread:$0]  %s329, 32, %s331, [#allocation6]
    $region29: #{tpu_custom_call.1} parent=1 // pred_fallthru
      _
    // Predicated region
    $region30: #{tpu_custom_call.1} parent=1 // pred_check
      _
    $region31: #{tpu_custom_call.1} parent=1 // pred_check_branch
      %335 = sbr.rel (0) target = $region33
    $region32: #{tpu_custom_call.1} parent=1 // pred_region
      %337 = vsyncadd [#allocation11], 0
      %s339 = sshll.u32 [#allocation10], 4
      %s340 = int_to_ptr.vmem [resolvable:$true] %s339
      %s341 = sshll.u32 %s3, 4
      %s342 = int_to_ptr.hbm [resolvable:$true] %s341
      %344 = dma.vmem_to_hbm [thread:$0]  %s340, 32, %s342, [#allocation11]
    $region33: #{tpu_custom_call.1} parent=1 // pred_fallthru
      _
    // Predicated region
    $region34: #{tpu_custom_call.1} parent=1 // pred_check
      _
    $region35: #{tpu_custom_call.1} parent=1 // pred_check_branch
      %346 = sbr.rel (0) target = $region37
    $region36: #{tpu_custom_call.1} parent=1 // pred_region
      %348 = dma.done [#allocation6], 32
    $region37: #{tpu_custom_call.1} parent=1 // pred_fallthru
      _
    // Predicated region
    $region38: #{tpu_custom_call.1} parent=1 // pred_check
      _
    $region39: #{tpu_custom_call.1} parent=1 // pred_check_branch
      %350 = sbr.rel (0) target = $region41
    $region40: #{tpu_custom_call.1} parent=1 // pred_region
      %352 = dma.done [#allocation11], 32
    $region41: #{tpu_custom_call.1} parent=1 // pred_fallthru
      _
    %353 = vsyncpa [#allocation5], 1
    %354 = vsyncpa [#allocation8], 1
    %355 = vsyncpa [#allocation6], 1
    %356 = vsyncpa [#allocation11], 1

</llo_original>
